<compile_context>
chip_gen: v5e
topology: v5e:2x2
jax: 0.10.0
libtpu: 0.0.40
codegen_flags: <defaults>
</compile_context>

<pallas_src>
import jax
import jax.numpy as jnp
from jax.experimental import pallas as pl
from jax.experimental.pallas import tpu as pltpu


def _round_up(x, m):
    return (x + m - 1) // m * m


# ---------------------------------------------------------------------------
# Kernels
# ---------------------------------------------------------------------------

def ffn_kernel_f32out(x_ref, w1_ref, b1_ref, w2_ref, b2_ref, o_ref):
    """f32 output: accumulate directly into o_ref (resident across the j axis)."""
    j = pl.program_id(1)

    @pl.when(j == 0)
    def _():
        o_ref[...] = jnp.zeros_like(o_ref)

    # First GEMM for this hidden slab + bias + ReLU (f32 accumulation).
    h = jnp.dot(x_ref[...], w1_ref[...], preferred_element_type=jnp.float32)
    h = jnp.maximum(h + b1_ref[...].astype(jnp.float32), 0.0)

    # Second GEMM: accumulate this hidden slab's contribution into the output.
    o_ref[...] += jnp.dot(h.astype(w2_ref.dtype), w2_ref[...],
                          preferred_element_type=jnp.float32)

    @pl.when(j == pl.num_programs(1) - 1)
    def _():
        o_ref[...] += b2_ref[...].astype(jnp.float32)


def ffn_kernel_scratch(x_ref, w1_ref, b1_ref, w2_ref, b2_ref, o_ref, acc_ref):
    """Non-f32 output: f32 VMEM accumulator, cast to output dtype on finalize."""
    j = pl.program_id(1)

    @pl.when(j == 0)
    def _():
        acc_ref[...] = jnp.zeros_like(acc_ref)

    h = jnp.dot(x_ref[...], w1_ref[...], preferred_element_type=jnp.float32)
    h = jnp.maximum(h + b1_ref[...].astype(jnp.float32), 0.0)
    acc_ref[...] += jnp.dot(h.astype(w2_ref.dtype), w2_ref[...],
                            preferred_element_type=jnp.float32)

    @pl.when(j == pl.num_programs(1) - 1)
    def _():
        o_ref[...] = (acc_ref[...] + b2_ref[...].astype(jnp.float32)).astype(o_ref.dtype)


# ---------------------------------------------------------------------------
# Wrapper
# ---------------------------------------------------------------------------

def _vmem_estimate(TM, TH, D, x_item, w_item, out_item, use_scratch):
    """Rough double-buffered VMEM footprint (bytes)."""
    b = 0
    b += 2 * TM * D * x_item        # x tile
    b += 2 * TM * D * out_item      # out tile
    b += 2 * D * TH * w_item        # W1 slab
    b += 2 * TH * D * w_item        # W2 slab
    b += 2 * (TH + D) * w_item      # biases
    if use_scratch:
        b += TM * D * 4             # f32 accumulator (single buffer)
    return b


def feedforward_pallas(x, w1, b1, w2, b2, *, row_tile=None, hidden_tile=None):
    """x: (..., model_dim) -> (..., model_dim), fused FFN (eval-mode dropout).

    Weights are stored transposed vs. nn.Linear.weight:
      w1: (model_dim, hidden_dim), w2: (hidden_dim, model_dim).
    row_tile    : optional token-tile override (rounded to sublane packing).
    hidden_tile : optional hidden-dim tile override (rounded to 128); if None the
                  kernel keeps the weights fully VMEM-resident when they fit.
    """
    D = x.shape[-1]
    H = w1.shape[-1]
    assert w1.shape == (D, H)
    assert w2.shape == (H, D)
    assert b1.shape == (H,)
    assert b2.shape == (D,)

    out_dtype = x.dtype
    x_item = jnp.dtype(x.dtype).itemsize
    w_item = jnp.dtype(w1.dtype).itemsize
    out_item = jnp.dtype(out_dtype).itemsize
    use_scratch = jnp.dtype(out_dtype) != jnp.dtype(jnp.float32)

    lead_shape = x.shape[:-1]
    x2 = x.reshape(-1, D)
    M = x2.shape[0]

    # Per-TensorCore VMEM capacity (64 MiB on v7x, 128 MiB on v5e/v6e).
    try:
        vmem_cap = int(pltpu.get_tpu_info().vmem_capacity_bytes)
    except Exception:
        vmem_cap = 64 * 1024 * 1024
    budget = int(0.85 * vmem_cap)

    # Sublane packing of the input dtype: 8 rows f32, 16 bf16, 32 int8/fp8.
    pack = 8 * max(1, 4 // x_item)

    # Row (token) tile: large enough to amortize per-step overhead and to keep
    # the MXU fed when weights must be streamed from HBM.
    TM = row_tile if row_tile is not None else 512
    TM = min(TM, _round_up(M, pack))
    TM = _round_up(TM, pack)

    # ---- hidden-dim tiling --------------------------------------------------
    if hidden_tile is not None:
        TH = min(_round_up(hidden_tile, 128), _round_up(H, 128))
        if TH >= H:
            TH = H
    else:
        # Fast path: both weight matrices fully resident in VMEM.
        if _vmem_estimate(TM, H, D, x_item, w_item, out_item, use_scratch) * 1.2 <= budget:
            TH = H
        else:
            TH = None
            # Prefer 256-multiples (256x256 MXU on v6e/v7x); 128 as last resort.
            for cand in (1024, 512, 256, 128):
                if cand <= _round_up(H, 128) and (
                    _vmem_estimate(TM, cand, D, x_item, w_item, out_item, use_scratch) * 1.2
                    <= budget
                ):
                    TH = cand
                    break
            if TH is None:
                TH = 128
                while TM > pack and (
                    _vmem_estimate(TM, TH, D, x_item, w_item, out_item, use_scratch) * 1.2
                    > budget
                ):
                    TM = max(pack, _round_up(TM // 2, pack))

    H_pad = H if TH == H else _round_up(H, TH)
    n_h = H_pad // TH

    # Dual-TensorCore (v7x): when weights are resident, make sure the
    # "parallel" M axis has at least 2 tiles so both cores get work.
    M_pad = _round_up(M, TM)
    if n_h == 1 and M_pad // TM < 2 and TM // 2 >= pack and (TM // 2) % pack == 0:
        TM //= 2
        M_pad = _round_up(M, TM)

    if M_pad != M:
        x2 = jnp.pad(x2, ((0, M_pad - M), (0, 0)))

    # Zero-pad the hidden dim: padded W1 columns -> ReLU(0) = 0, padded W2 rows
    # contribute nothing, so no masking is needed.
    if H_pad != H:
        w1 = jnp.pad(w1, ((0, 0), (0, H_pad - H)))
        b1 = jnp.pad(b1, ((0, H_pad - H),))
        w2 = jnp.pad(w2, ((0, H_pad - H), (0, 0)))

    b1_2d = b1.reshape(1, H_pad)
    b2_2d = b2.reshape(1, D)

    grid = (M_pad // TM, n_h)

    est_vmem = _vmem_estimate(TM, TH, D, x_item, w_item, out_item, use_scratch)
    vmem_limit = int(min(max(1.5 * est_vmem, 32 * 1024 * 1024), vmem_cap))

    # Weights are re-streamed per row tile only when the hidden axis is tiled.
    weight_streams = 1 if n_h == 1 else grid[0]
    cost = pl.CostEstimate(
        flops=4 * M_pad * D * H_pad,   # two GEMMs, 2 flops / MAC
        transcendentals=0,
        bytes_accessed=int((x_item + out_item) * M_pad * D
                           + weight_streams * w_item * (2 * D * H_pad + H_pad + D)),
    )

    kernel = ffn_kernel_scratch if use_scratch else ffn_kernel_f32out
    scratch = [pltpu.VMEM((TM, D), jnp.float32)] if use_scratch else []

    out = pl.pallas_call(
        kernel,
        out_shape=jax.ShapeDtypeStruct((M_pad, D), out_dtype),
        grid_spec=pltpu.PrefetchScalarGridSpec(
            num_scalar_prefetch=0,
            grid=grid,
            in_specs=[
                pl.BlockSpec((TM, D), lambda i, j: (i, 0)),    # x tile
                pl.BlockSpec((D, TH), lambda i, j: (0, j)),    # W1 slab
                pl.BlockSpec((1, TH), lambda i, j: (0, j)),    # b1 slab
                pl.BlockSpec((TH, D), lambda i, j: (j, 0)),    # W2 slab
                pl.BlockSpec((1, D), lambda i, j: (0, 0)),     # b2 (constant)
            ],
            out_specs=pl.BlockSpec((TM, D), lambda i, j: (i, 0)),
            scratch_shapes=scratch,
        ),
        compiler_params=pltpu.CompilerParams(
            dimension_semantics=("parallel", "arbitrary"),
            vmem_limit_bytes=vmem_limit,
        ),
        cost_estimate=cost,
    )(x2, w1, b1_2d, w2, b2_2d)

    return out[:M].reshape(*lead_shape, D)


def init_feedforward_params(key, model_dim, hidden_dim, dtype=jnp.float32):
    """Deterministic init mimicking nn.Linear's U(-1/sqrt(fan_in), 1/sqrt(fan_in))."""
    k1, k2, k3, k4 = jax.random.split(key, 4)
    bound1 = 1.0 / jnp.sqrt(model_dim)
    bound2 = 1.0 / jnp.sqrt(hidden_dim)
    # Stored transposed vs. nn.Linear.weight: (in, out) so the kernel does x @ W.
    w1 = jax.random.uniform(k1, (model_dim, hidden_dim), dtype, -bound1, bound1)
    b1 = jax.random.uniform(k2, (hidden_dim,), dtype, -bound1, bound1)
    w2 = jax.random.uniform(k3, (hidden_dim, model_dim), dtype, -bound2, bound2)
    b2 = jax.random.uniform(k4, (model_dim,), dtype, -bound2, bound2)
    return w1, b1, w2, b2


if __name__ == "__main__":
    key = jax.random.PRNGKey(0)
    kx, kp = jax.random.split(key)

    # Small but lane-dense test shapes (model_dim / hidden_dim multiples of 128).
    batch, seq, model_dim, hidden_dim = 2, 64, 128, 256
    dropout_rate = 0.1  # identity in eval mode

    x = jax.random.normal(kx, (batch, seq, model_dim), dtype=jnp.float32)
    w1, b1, w2, b2 = init_feedforward_params(kp, model_dim, hidden_dim)
    y_ref = jnp.maximum(x @ w1 + b1, 0.0) @ w2 + b2

    # 1) Auto config: weights fully resident (TH = H), >=2 row tiles, f32
    #    accumulation directly in the output block.
    y = feedforward_pallas(x, w1, b1, w2, b2)
    jax.block_until_ready(y)
    assert y.shape == (batch, seq, model_dim)
    assert jnp.allclose(y, y_ref, atol=1e-4, rtol=1e-4)

    # 2) Forced hidden-dim streaming: exercises the j-axis accumulation path.
    y2 = feedforward_pallas(x, w1, b1, w2, b2, row_tile=64, hidden_tile=128)
    jax.block_until_ready(y2)
    assert jnp.allclose(y2, y_ref, atol=1e-4, rtol=1e-4)

    # 3) bf16 path (scratch-accumulator kernel), streamed hidden dim.
    xb = x.astype(jnp.bfloat16)
    w1b, b1b, w2b, b2b = (t.astype(jnp.bfloat16) for t in (w1, b1, w2, b2))
    yb = feedforward_pallas(xb, w1b, b1b, w2b, b2b, row_tile=64, hidden_tile=128)
    jax.block_until_ready(yb)
    yb_ref = (jnp.maximum(xb.astype(jnp.float32) @ w1b.astype(jnp.float32)
                          + b1b.astype(jnp.float32), 0.0)
              @ w2b.astype(jnp.float32) + b2b.astype(jnp.float32))
    assert yb.shape == (batch, seq, model_dim)
    assert jnp.allclose(yb.astype(jnp.float32), yb_ref, atol=5e-2, rtol=5e-2)

    # 4) Hidden dim that is not a multiple of the tile: exercises zero-padded H.
    hidden_dim2 = 320
    w1c, b1c, w2c, b2c = init_feedforward_params(jax.random.PRNGKey(1),
                                                 model_dim, hidden_dim2)
    yc_ref = jnp.maximum(x @ w1c + b1c, 0.0) @ w2c + b2c
    yc = feedforward_pallas(x, w1c, b1c, w2c, b2c, hidden_tile=256)
    jax.block_until_ready(yc)
    assert jnp.allclose(yc, yc_ref, atol=1e-4, rtol=1e-4)

    print("KERNEL_OK")
</pallas_src>

<mosaic_0001>
module attributes {stable_mosaic.version = 11 : i64} {
  func.func @ffn_kernel_f32out(%arg0: i32, %arg1: i32, %arg2: memref<64x128xf32, #tpu.memory_space<vmem>>, %arg3: memref<128x256xf32, #tpu.memory_space<vmem>>, %arg4: memref<1x256xf32, #tpu.memory_space<vmem>>, %arg5: memref<256x128xf32, #tpu.memory_space<vmem>>, %arg6: memref<1x128xf32, #tpu.memory_space<vmem>>, %arg7: memref<64x128xf32, #tpu.memory_space<vmem>>) attributes {dimension_semantics = [#tpu.dimension_semantics<parallel>, #tpu.dimension_semantics<arbitrary>], iteration_bounds = array<i64: 2, 1>, scalar_prefetch = 0 : i64, scratch_operands = 0 : i64, tpu.core_type = #tpu.core_type<tc>, window_params = [{transform_indices = @transform_0, window_bounds = array<i64: 64, 128>}, {transform_indices = @transform_1, window_bounds = array<i64: 128, 256>}, {transform_indices = @transform_2, window_bounds = array<i64: 1, 256>}, {transform_indices = @transform_3, window_bounds = array<i64: 256, 128>}, {pipeline_mode = #tpu.pipeline_mode<synchronous>, transform_indices = @transform_4, window_bounds = array<i64: 1, 128>}, {transform_indices = @transform_5, window_bounds = array<i64: 64, 128>}]} {
    %c0_i32 = arith.constant 0 : i32
    %0 = arith.cmpi eq, %arg1, %c0_i32 : i32
    %1 = arith.extui %0 : i1 to i32
    %c0_i32_0 = arith.constant 0 : i32
    %2 = arith.cmpi ne, %1, %c0_i32_0 : i32
    scf.if %2 {
      %cst_16 = arith.constant 0.000000e+00 : f32
      %19 = vector.broadcast %cst_16 : f32 to vector<64x128xf32>
      %c0_17 = arith.constant 0 : index
      %c0_18 = arith.constant 0 : index
      %20 = vector.load %arg7[%c0_17, %c0_18] : memref<64x128xf32, #tpu.memory_space<vmem>>, vector<64x128xf32>
      tpu.vector_store %arg7[%c0_17, %c0_18], %19 {strides = array<i32>} : memref<64x128xf32, #tpu.memory_space<vmem>>, vector<64x128xf32>,
    } else {
    }
    %c0 = arith.constant 0 : index
    %c0_1 = arith.constant 0 : index
    %3 = vector.load %arg2[%c0, %c0_1] : memref<64x128xf32, #tpu.memory_space<vmem>>, vector<64x128xf32>
    %c0_2 = arith.constant 0 : index
    %c0_3 = arith.constant 0 : index
    %4 = vector.load %arg3[%c0_2, %c0_3] : memref<128x256xf32, #tpu.memory_space<vmem>>, vector<128x256xf32>
    %cst = arith.constant dense<0.000000e+00> : vector<64x256xf32>
    %5 = tpu.matmul %3, %4, %cst {dimension_numbers = #tpu.dot_dimension_numbers<[1], [0], [0], [1], [0, 0, 1, 1], [], []>} : vector<64x128xf32>, vector<128x256xf32>, vector<64x256xf32> -> vector<64x256xf32>
    %c0_4 = arith.constant 0 : index
    %c0_5 = arith.constant 0 : index
    %6 = vector.load %arg4[%c0_4, %c0_5] : memref<1x256xf32, #tpu.memory_space<vmem>>, vector<1x256xf32>
    %7 = vector.broadcast %6 : vector<1x256xf32> to vector<64x256xf32>
    %8 = arith.addf %5, %7 : vector<64x256xf32>
    %cst_6 = arith.constant 0.000000e+00 : f32
    %9 = vector.broadcast %cst_6 : f32 to vector<64x256xf32>
    %10 = arith.maximumf %8, %9 : vector<64x256xf32>
    %c0_7 = arith.constant 0 : index
    %c0_8 = arith.constant 0 : index
    %11 = vector.load %arg7[%c0_7, %c0_8] : memref<64x128xf32, #tpu.memory_space<vmem>>, vector<64x128xf32>
    %c0_9 = arith.constant 0 : index
    %c0_10 = arith.constant 0 : index
    %12 = vector.load %arg5[%c0_9, %c0_10] : memref<256x128xf32, #tpu.memory_space<vmem>>, vector<256x128xf32>
    %cst_11 = arith.constant dense<0.000000e+00> : vector<64x128xf32>
    %13 = tpu.matmul %10, %12, %cst_11 {dimension_numbers = #tpu.dot_dimension_numbers<[1], [0], [0], [1], [0, 0, 1, 1], [], []>} : vector<64x256xf32>, vector<256x128xf32>, vector<64x128xf32> -> vector<64x128xf32>
    %14 = arith.addf %11, %13 : vector<64x128xf32>
    %c0_12 = arith.constant 0 : index
    %c0_13 = arith.constant 0 : index
    %15 = vector.load %arg7[%c0_12, %c0_13] : memref<64x128xf32, #tpu.memory_space<vmem>>, vector<64x128xf32>
    tpu.vector_store %arg7[%c0_12, %c0_13], %14 {strides = array<i32>} : memref<64x128xf32, #tpu.memory_space<vmem>>, vector<64x128xf32>,
    %c0_i32_14 = arith.constant 0 : i32
    %16 = arith.cmpi eq, %arg1, %c0_i32_14 : i32
    %17 = arith.extui %16 : i1 to i32
    %c0_i32_15 = arith.constant 0 : i32
    %18 = arith.cmpi ne, %17, %c0_i32_15 : i32
    scf.if %18 {
      %c0_16 = arith.constant 0 : index
      %c0_17 = arith.constant 0 : index
      %19 = vector.load %arg7[%c0_16, %c0_17] : memref<64x128xf32, #tpu.memory_space<vmem>>, vector<64x128xf32>
      %c0_18 = arith.constant 0 : index
      %c0_19 = arith.constant 0 : index
      %20 = vector.load %arg6[%c0_18, %c0_19] : memref<1x128xf32, #tpu.memory_space<vmem>>, vector<1x128xf32>
      %21 = vector.broadcast %20 : vector<1x128xf32> to vector<64x128xf32>
      %22 = arith.addf %19, %21 : vector<64x128xf32>
      %c0_20 = arith.constant 0 : index
      %c0_21 = arith.constant 0 : index
      %23 = vector.load %arg7[%c0_20, %c0_21] : memref<64x128xf32, #tpu.memory_space<vmem>>, vector<64x128xf32>
      tpu.vector_store %arg7[%c0_20, %c0_21], %22 {strides = array<i32>} : memref<64x128xf32, #tpu.memory_space<vmem>>, vector<64x128xf32>,
    } else {
    }
    return
  }
  func.func @transform_0(%arg0: i32, %arg1: i32) -> (i32, i32) {
    %c0_i32 = arith.constant 0 : i32
    %c0_i32_0 = arith.constant 0 : i32
    return %arg0, %c0_i32 : i32, i32
  }
  func.func @transform_1(%arg0: i32, %arg1: i32) -> (i32, i32) {
    %c0_i32 = arith.constant 0 : i32
    %c0_i32_0 = arith.constant 0 : i32
    return %c0_i32, %arg1 : i32, i32
  }
  func.func @transform_2(%arg0: i32, %arg1: i32) -> (i32, i32) {
    %c0_i32 = arith.constant 0 : i32
    %c0_i32_0 = arith.constant 0 : i32
    return %c0_i32, %arg1 : i32, i32
  }
  func.func @transform_3(%arg0: i32, %arg1: i32) -> (i32, i32) {
    %c0_i32 = arith.constant 0 : i32
    %c0_i32_0 = arith.constant 0 : i32
    return %arg1, %c0_i32 : i32, i32
  }
  func.func @transform_4(%arg0: i32, %arg1: i32) -> (i32, i32) {
    %c0_i32 = arith.constant 0 : i32
    %c0_i32_0 = arith.constant 0 : i32
    %c0_i32_1 = arith.constant 0 : i32
    return %c0_i32, %c0_i32_0 : i32, i32
  }
  func.func @transform_5(%arg0: i32, %arg1: i32) -> (i32, i32) {
    %c0_i32 = arith.constant 0 : i32
    %c0_i32_0 = arith.constant 0 : i32
    return %arg0, %c0_i32 : i32, i32
  }
}

</mosaic_0001>

<llo_original>
// kernel: tpu_custom_call.1
$region0: #{tpu_custom_call.1}
  #allocation0 [shape = 'u32[]', space=smem, size = 0x4, offset = 0x4, fixed_abs, tag = 'smem constant byte address 0x4 - core index']
  #allocation1 [shape = 'u32[72,128]{1,0:T(1,128)}', space=vmem, size = 0x9000, scoped, tag = 'internal scratch']
  %s0 = inlined_call_operand.hbm [shape: f32[128,128], index: 0, kind: input, shape index: {}]
  %s1 = inlined_call_operand.hbm [shape: f32[128,256], index: 1, kind: input, shape index: {}]
  %s2 = inlined_call_operand.hbm [shape: f32[1,256], index: 2, kind: input, shape index: {}]
  %s3 = inlined_call_operand.hbm [shape: f32[256,128], index: 3, kind: input, shape index: {}]
  %s4 = inlined_call_operand.vmem [shape: f32[1,128], index: 4, kind: input, shape index: {}]
  %s5 = inlined_call_operand.hbm [shape: f32[128,128], index: 5, kind: output, shape index: {}]
  %s6 = sld [smem:[#allocation0]]
  $region77: #{tpu_custom_call.1} parent=0
    _
  %s8 = ssub.s32 1, %s6
  %s9 = scalar_select 0, %s8, %s6
  $region1: #{tpu_custom_call.1} parent=0
    #allocation2 [shape = 'u8[65536]{0}', space=vmem, size = 0x10000, scoped, tag = 'input window, operand 0']
    #allocation3 [shape = 's32[2]{0}', space=sflag, size = 0x8, scoped, tag = 'scoped memory for tpu_custom_call.1']
    #allocation4 [shape = 's32[2]{0}', space=sflag, size = 0x8, scoped, tag = 'scoped memory for tpu_custom_call.1']
    #allocation5 [shape = 'u8[131072]{0}', space=vmem, size = 0x20000, scoped, tag = 'input window, operand 1, single buffered']
    #allocation6 [shape = 's32[1]{0}', space=sflag, size = 0x4, scoped, tag = 'scoped memory for tpu_custom_call.1']
    #allocation7 [shape = 'u8[1024]{0}', space=vmem, size = 0x400, scoped, tag = 'input window, operand 2, single buffered']
    #allocation8 [shape = 'u8[131072]{0}', space=vmem, size = 0x20000, scoped, tag = 'input window, operand 3, single buffered']
    #allocation9 [shape = 's32[1]{0}', space=sflag, size = 0x4, scoped, tag = 'scoped memory for tpu_custom_call.1']
    #allocation10 [shape = 'u8[65536]{0}', space=vmem, size = 0x10000, scoped, tag = 'output window, operand 0']
    %10 = vsyncpa [#allocation3], 0
    %s11 = scalar_lea.sflag [#allocation3], 1
    %12 = vsyncpa %s11, 0
    %13 = vsyncpa [#allocation6], 0
    %14 = vsyncpa [#allocation9], 0
    %15 = vsyncpa [#allocation4], 0
    %s16 = scalar_lea.sflag [#allocation4], 1
    %17 = vsyncpa %s16, 0
    loop: start=0, step=1, limit=4
    $region2: #{tpu_custom_call.1} parent=1 // loop_pre_header
      _
    $region3: #{tpu_custom_call.1} parent=1 // loop_header
      %s19 = sphi 0, %s23
      %p20 = scmp.ge.s32.totalorder %s19, 4
      %s26 = sphi 0, %s38
      %s27 = sphi 0, %s34
      %s28 = sphi 0, %s26
      %s29 = sphi 0, %s27
      %s30 = sphi 0, %s28
      %s31 = sphi 0, %s29
      %s41 = sphi 0, %s43
      %s44 = sphi 0, %s41
      %s45 = sphi 0, %s44
      %s61 = sphi 0, %s45
      %s67 = sphi 0, %s69
      %s70 = sphi 0, %s67
      %s71 = sphi 0, %s70
      %s87 = sphi 0, %s71
      %s93 = sphi 0, %s95
      %s96 = sphi 0, %s93
      %s97 = sphi 0, %s96
      %s113 = sphi 0, %s97
      %s119 = sphi 0, %s121
      %s122 = sphi 0, %s119
      %s123 = sphi 0, %s122
      %s139 = sphi 0, %s123
      %s143 = sphi 0, %s143
      %s145 = sphi 0, %s143
      %s146 = sphi 0, %s145
      %s160 = sphi 0, %s146
      %s166 = sphi 0, %s168
      %s169 = sphi 0, %s166
      %s170 = sphi 0, %s169
      %s186 = sphi 0, %s170
    $region4: #{tpu_custom_call.1} parent=1 // loop_header_branch
      %22 = sbr.rel (%p20) target = $region8
    $region5: #{tpu_custom_call.1} parent=1 // loop_body
      %s24 = ssub.s32 %s19, 1
      %s25 = ssub.s32 %s19, 2
      %s32 = sadd.s32 1, %s27
      %p33 = scmp.ge.s32.totalorder %s32, 1
      %s34 = scalar_select %p33, 0, %s32
      %s35 = sadd.s32 1, %s26
      %s36 = scalar_select %p33, %s35, %s26
      %p37 = scmp.ge.s32.totalorder %s36, 2
      %s38 = scalar_select %p37, 0, %s36
      %s39 = ssub.s32 %s26, %s38
      %p40 = scmp.eq.s32.totalorder %s39, 0
      %s42 = sadd.s32 %s41, 1
      %s43 = scalar_select %p40, %s41, %s42
      %p46 = pneg %p40
      %p47 = scmp.eq.s32.totalorder %s19, 1
      %p48 = por %p46, %p47
      %p49 = scmp.ne.s32.totalorder %s41, %s44
      %p50 = scmp.eq.s32.totalorder %s19, 0
      %p51 = por %p49, %p50
      %p52 = scmp.ne.s32.totalorder %s41, %s44
      %p53 = scmp.eq.s32.totalorder %s24, 1
      %p54 = por %p52, %p53
      %p55 = scmp.ne.s32.totalorder %s44, %s45
      %p56 = scmp.eq.s32.totalorder %s24, 0
      %p57 = por %p55, %p56
      %p58 = scmp.ne.s32.totalorder %s44, %s45
      %p59 = scmp.eq.s32.totalorder %s25, 1
      %p60 = por %p58, %p59
      %p62 = scmp.ne.s32.totalorder %s45, %s61
      %p63 = scmp.eq.s32.totalorder %s25, 0
      %p64 = por %p62, %p63
      %s65 = ssub.s32 %s27, %s34
      %p66 = scmp.eq.s32.totalorder %s65, 0
      %s68 = sadd.s32 %s67, 1
      %s69 = scalar_select %p66, %s67, %s68
      %p72 = pneg %p66
      %p73 = scmp.eq.s32.totalorder %s19, 1
      %p74 = por %p72, %p73
      %p75 = scmp.ne.s32.totalorder %s67, %s70
      %p76 = scmp.eq.s32.totalorder %s19, 0
      %p77 = por %p75, %p76
      %p78 = scmp.ne.s32.totalorder %s67, %s70
      %p79 = scmp.eq.s32.totalorder %s24, 1
      %p80 = por %p78, %p79
      %p81 = scmp.ne.s32.totalorder %s70, %s71
      %p82 = scmp.eq.s32.totalorder %s24, 0
      %p83 = por %p81, %p82
      %p84 = scmp.ne.s32.totalorder %s70, %s71
      %p85 = scmp.eq.s32.totalorder %s25, 1
      %p86 = por %p84, %p85
      %p88 = scmp.ne.s32.totalorder %s71, %s87
      %p89 = scmp.eq.s32.totalorder %s25, 0
      %p90 = por %p88, %p89
      %s91 = ssub.s32 %s27, %s34
      %p92 = scmp.eq.s32.totalorder %s91, 0
      %s94 = sadd.s32 %s93, 1
      %s95 = scalar_select %p92, %s93, %s94
      %p98 = pneg %p92
      %p99 = scmp.eq.s32.totalorder %s19, 1
      %p100 = por %p98, %p99
      %p101 = scmp.ne.s32.totalorder %s93, %s96
      %p102 = scmp.eq.s32.totalorder %s19, 0
      %p103 = por %p101, %p102
      %p104 = scmp.ne.s32.totalorder %s93, %s96
      %p105 = scmp.eq.s32.totalorder %s24, 1
      %p106 = por %p104, %p105
      %p107 = scmp.ne.s32.totalorder %s96, %s97
      %p108 = scmp.eq.s32.totalorder %s24, 0
      %p109 = por %p107, %p108
      %p110 = scmp.ne.s32.totalorder %s96, %s97
      %p111 = scmp.eq.s32.totalorder %s25, 1
      %p112 = por %p110, %p111
      %p114 = scmp.ne.s32.totalorder %s97, %s113
      %p115 = scmp.eq.s32.totalorder %s25, 0
      %p116 = por %p114, %p115
      %s117 = ssub.s32 %s27, %s34
      %p118 = scmp.eq.s32.totalorder %s117, 0
      %s120 = sadd.s32 %s119, 1
      %s121 = scalar_select %p118, %s119, %s120
      %p124 = pneg %p118
      %p125 = scmp.eq.s32.totalorder %s19, 1
      %p126 = por %p124, %p125
      %p127 = scmp.ne.s32.totalorder %s119, %s122
      %p128 = scmp.eq.s32.totalorder %s19, 0
      %p129 = por %p127, %p128
      %p130 = scmp.ne.s32.totalorder %s119, %s122
      %p131 = scmp.eq.s32.totalorder %s24, 1
      %p132 = por %p130, %p131
      %p133 = scmp.ne.s32.totalorder %s122, %s123
      %p134 = scmp.eq.s32.totalorder %s24, 0
      %p135 = por %p133, %p134
      %p136 = scmp.ne.s32.totalorder %s122, %s123
      %p137 = scmp.eq.s32.totalorder %s25, 1
      %p138 = por %p136, %p137
      %p140 = scmp.ne.s32.totalorder %s123, %s139
      %p141 = scmp.eq.s32.totalorder %s25, 0
      %p142 = por %p140, %p141
      %s144 = sadd.s32 %s143, 1
      %p147 = scmp.eq.s32.totalorder %s19, 1
      %p148 = scmp.ne.s32.totalorder %s143, %s145
      %p149 = scmp.eq.s32.totalorder %s19, 0
      %p150 = por %p148, %p149
      %p151 = scmp.ne.s32.totalorder %s143, %s145
      %p152 = scmp.eq.s32.totalorder %s24, 1
      %p153 = por %p151, %p152
      %p154 = scmp.ne.s32.totalorder %s145, %s146
      %p155 = scmp.eq.s32.totalorder %s24, 0
      %p156 = por %p154, %p155
      %p157 = scmp.ne.s32.totalorder %s145, %s146
      %p158 = scmp.eq.s32.totalorder %s25, 1
      %p159 = por %p157, %p158
      %p161 = scmp.ne.s32.totalorder %s146, %s160
      %p162 = scmp.eq.s32.totalorder %s25, 0
      %p163 = por %p161, %p162
      %s164 = ssub.s32 %s26, %s38
      %p165 = scmp.eq.s32.totalorder %s164, 0
      %s167 = sadd.s32 %s166, 1
      %s168 = scalar_select %p165, %s166, %s167
      %p171 = pneg %p165
      %p172 = scmp.eq.s32.totalorder %s19, 1
      %p173 = por %p171, %p172
      %p174 = scmp.ne.s32.totalorder %s166, %s169
      %p175 = scmp.eq.s32.totalorder %s19, 0
      %p176 = por %p174, %p175
      %p177 = scmp.ne.s32.totalorder %s166, %s169
      %p178 = scmp.eq.s32.totalorder %s24, 1
      %p179 = por %p177, %p178
      %p180 = scmp.ne.s32.totalorder %s169, %s170
      %p181 = scmp.eq.s32.totalorder %s24, 0
      %p182 = por %p180, %p181
      %p183 = scmp.ne.s32.totalorder %s169, %s170
      %p184 = scmp.eq.s32.totalorder %s25, 1
      %p185 = por %p183, %p184
      %p187 = scmp.ne.s32.totalorder %s170, %s186
      %p188 = scmp.eq.s32.totalorder %s25, 0
      %p189 = por %p187, %p188
      %p190 = scmp.le.s32.totalorder 1, %s19
      %p191 = scmp.lt.s32.totalorder %s19, 3
      %p192 = pnand %p190, %p191
      %p193 = pneg %p192
      // Predicated region
      $region9: #{tpu_custom_call.1} parent=5 // pred_check
        _
      $region10: #{tpu_custom_call.1} parent=5 // pred_check_branch
        %195 = sbr.rel (%p192) target = $region12
      $region11: #{tpu_custom_call.1} parent=5 // pred_region
        %s196 = ssub.s32 %s19, 1
        // Predicated region
        $region13: #{tpu_custom_call.1} parent=11 // pred_check
          %p197 = pneg %p83
        $region14: #{tpu_custom_call.1} parent=11 // pred_check_branch
          %199 = sbr.rel (%p197) target = $region16
        $region15: #{tpu_custom_call.1} parent=11 // pred_region
          %s200 = smul.u32 2, %s29
          %202 = vsyncadd [#allocation6], 0
          %s203 = smul.addr %s200, 8
          %s204 = scalar_lea.hbm %s1, %s203
          %s205 = sshll.u32 %s204, 4
          %s206 = int_to_ptr.hbm [resolvable:$true] %s205
          %s207 = sshll.u32 [#allocation5], 4
          %s208 = int_to_ptr.vmem [resolvable:$true] %s207
          %213 = dma.hbm_to_vmem [thread:$0]  %s206, 4096, %s208, [#allocation6], 256, 256, 16
        $region16: #{tpu_custom_call.1} parent=11 // pred_fallthru
          _
        // Predicated region
        $region17: #{tpu_custom_call.1} parent=11 // pred_check
          %p214 = pneg %p109
        $region18: #{tpu_custom_call.1} parent=11 // pred_check_branch
          %216 = sbr.rel (%p214) target = $region20
        $region19: #{tpu_custom_call.1} parent=11 // pred_region
          %s217 = smul.u32 2, %s29
          %219 = vsyncadd [#allocation6], 0
          %s220 = scalar_lea.hbm %s2, %s217
          %s222 = sshll.u32 %s220, 4
          %s223 = int_to_ptr.hbm [resolvable:$true] %s222
          %s224 = sshll.u32 [#allocation7], 4
          %s225 = int_to_ptr.vmem [resolvable:$true] %s224
          %227 = dma.hbm_to_vmem [thread:$0]  %s223, 32, %s225, [#allocation6]
        $region20: #{tpu_custom_call.1} parent=11 // pred_fallthru
          _
        // Predicated region
        $region21: #{tpu_custom_call.1} parent=11 // pred_check
          %p228 = pneg %p135
        $region22: #{tpu_custom_call.1} parent=11 // pred_check_branch
          %230 = sbr.rel (%p228) target = $region24
        $region23: #{tpu_custom_call.1} parent=11 // pred_region
          %s231 = smul.u32 32, %s29
          %233 = vsyncadd [#allocation9], 0
          %s234 = smul.addr %s231, 8
          %s235 = scalar_lea.hbm %s3, %s234
          %s236 = sshll.u32 %s235, 4
          %s237 = int_to_ptr.hbm [resolvable:$true] %s236
          %s238 = sshll.u32 [#allocation8], 4
          %s239 = int_to_ptr.vmem [resolvable:$true] %s238
          %244 = dma.hbm_to_vmem [thread:$0]  %s237, 4096, %s239, [#allocation9], 128, 128, 8
        $region24: #{tpu_custom_call.1} parent=11 // pred_fallthru
          _
        // Predicated region
        $region25: #{tpu_custom_call.1} parent=11 // pred_check
          %p245 = pneg %p156
        $region26: #{tpu_custom_call.1} parent=11 // pred_check_branch
          %247 = sbr.rel (%p245) target = $region28
        $region27: #{tpu_custom_call.1} parent=11 // pred_region
          _
        $region28: #{tpu_custom_call.1} parent=11 // pred_fallthru
          _
      $region12: #{tpu_custom_call.1} parent=5 // pred_fallthru
        _
      %p248 = scmp.lt.s32.totalorder %s19, 2
      // Predicated region
      $region29: #{tpu_custom_call.1} parent=5 // pred_check
        %p249 = pneg %p248
      $region30: #{tpu_custom_call.1} parent=5 // pred_check_branch
        %251 = sbr.rel (%p249) target = $region32
      $region31: #{tpu_custom_call.1} parent=5 // pred_region
        // Predicated region
        $region33: #{tpu_custom_call.1} parent=31 // pred_check
          %p252 = pneg %p51
        $region34: #{tpu_custom_call.1} parent=31 // pred_check_branch
          %254 = sbr.rel (%p252) target = $region36
        $region35: #{tpu_custom_call.1} parent=31 // pred_region
          %s255 = sand.u32 %s41, 1
          %s256 = scalar_lea.sflag [#allocation3], %s255
          %s257 = sand.u32 %s41, 1
          %s258 = smul.addr %s257, 64
          %s259 = scalar_lea.vmem [#allocation2], %s258
          %s260 = smul.u32 8, %s26
          %262 = vsyncadd %s256, 0
          %s263 = smul.addr %s260, 8
          %s264 = scalar_lea.hbm %s0, %s263
          %s265 = sshll.u32 %s264, 4
          %s266 = int_to_ptr.hbm [resolvable:$true] %s265
          %s267 = sshll.u32 %s259, 4
          %s268 = int_to_ptr.vmem [resolvable:$true] %s267
          %273 = dma.hbm_to_vmem [thread:$0]  %s266, 1024, %s268, %s256, 128, 128, 8
        $region36: #{tpu_custom_call.1} parent=31 // pred_fallthru
          _
      $region32: #{tpu_custom_call.1} parent=5 // pred_fallthru
        _
      %p274 = scmp.le.s32.totalorder 1, %s19
      %p275 = scmp.lt.s32.totalorder %s19, 3
      %p276 = pnand %p274, %p275
      %p277 = pneg %p276
      // Predicated region
      $region37: #{tpu_custom_call.1} parent=5 // pred_check
        _
      $region38: #{tpu_custom_call.1} parent=5 // pred_check_branch
        %279 = sbr.rel (%p276) target = $region40
      $region39: #{tpu_custom_call.1} parent=5 // pred_region
        %s280 = ssub.s32 %s19, 1
        %s281 = sand.u32 %s44, 1
        %s282 = scalar_lea.sflag [#allocation3], %s281
        %s283 = sand.u32 %s44, 1
        %s284 = smul.addr %s283, 64
        %s285 = scalar_lea.vmem [#allocation2], %s284
        // Predicated region
        $region41: #{tpu_custom_call.1} parent=39 // pred_check
          %p286 = pneg %p57
        $region42: #{tpu_custom_call.1} parent=39 // pred_check_branch
          %288 = sbr.rel (%p286) target = $region44
        $region43: #{tpu_custom_call.1} parent=39 // pred_region
          %290 = dma.done %s282, 1024
        $region44: #{tpu_custom_call.1} parent=39 // pred_fallthru
          _
        // Predicated region
        $region45: #{tpu_custom_call.1} parent=39 // pred_check
          %p291 = pneg %p83
        $region46: #{tpu_custom_call.1} parent=39 // pred_check_branch
          %293 = sbr.rel (%p291) target = $region48
        $region47: #{tpu_custom_call.1} parent=39 // pred_region
          %295 = dma.done [#allocation6], 4096
        $region48: #{tpu_custom_call.1} parent=39 // pred_fallthru
          _
        // Predicated region
        $region49: #{tpu_custom_call.1} parent=39 // pred_check
          %p296 = pneg %p109
        $region50: #{tpu_custom_call.1} parent=39 // pred_check_branch
          %298 = sbr.rel (%p296) target = $region52
        $region51: #{tpu_custom_call.1} parent=39 // pred_region
          %300 = dma.done [#allocation6], 32
        $region52: #{tpu_custom_call.1} parent=39 // pred_fallthru
          _
        // Predicated region
        $region53: #{tpu_custom_call.1} parent=39 // pred_check
          %p301 = pneg %p135
        $region54: #{tpu_custom_call.1} parent=39 // pred_check_branch
          %303 = sbr.rel (%p301) target = $region56
        $region55: #{tpu_custom_call.1} parent=39 // pred_region
          %305 = dma.done [#allocation9], 4096
        $region56: #{tpu_custom_call.1} parent=39 // pred_fallthru
          _
        %s306 = sand.u32 %s44, 1
        %s307 = scalar_lea.sflag [#allocation3], %s306
        %s308 = sand.u32 %s44, 1
        %s309 = smul.addr %s308, 64
        %s310 = scalar_lea.vmem [#allocation2], %s309
        %p311 = pneg %p57
        %p312 = pneg %p54
        %p313 = pneg %p83
        %p314 = pneg %p80
        %p315 = pneg %p109
        %p316 = pneg %p106
        %p317 = pneg %p135
        %p318 = pneg %p132
        %p319 = pneg %p156
        %p320 = pneg %p153
        %p321 = pneg %p182
        %p322 = pneg %p179
        %s323 = sand.u32 %s169, 1
        %s324 = scalar_lea.sflag [#allocation4], %s323
        %s325 = sand.u32 %s169, 1
        %s326 = smul.addr %s325, 64
        %s327 = scalar_lea.vmem [#allocation10], %s326
        %s328 = smul.u32 8, %s28
        %s329 = smul.u32 2, %s29
        %s330 = smul.u32 2, %s29
        %s331 = smul.u32 32, %s29
        %s332 = smul.u32 8, %s28
        %p333 = scmp.eq.s32.totalorder %s29, 0
        // Predicated region
        $region57: #{tpu_custom_call.1} parent=39 // pred_check
          %p334 = pneg %p333
        $region58: #{tpu_custom_call.1} parent=39 // pred_check_branch
          %336 = sbr.rel (%p334) target = $region60
        $region59: #{tpu_custom_call.1} parent=39 // pred_region
          %337 = vst [vmem:[%s327] sm:$0xff] 0.0
          %338 = vst [vmem:[%s327 + $0x8] sm:$0xff] 0.0
          %339 = vst [vmem:[%s327 + $0x10] sm:$0xff] 0.0
          %340 = vst [vmem:[%s327 + $0x18] sm:$0xff] 0.0
          %341 = vst [vmem:[%s327 + $0x20] sm:$0xff] 0.0
          %342 = vst [vmem:[%s327 + $0x28] sm:$0xff] 0.0
          %343 = vst [vmem:[%s327 + $0x30] sm:$0xff] 0.0
          %344 = vst [vmem:[%s327 + $0x38] sm:$0xff] 0.0
        $region60: #{tpu_custom_call.1} parent=39 // pred_fallthru
          _
        %v345 = vld [vmem:[%s285] sm:$0xff]
        %v346 = vld [vmem:[%s285 + $0x8] sm:$0xff]
        %v347 = vld [vmem:[%s285 + $0x10] sm:$0xff]
        %v348 = vld [vmem:[%s285 + $0x18] sm:$0xff]
        %v349 = vld [vmem:[%s285 + $0x20] sm:$0xff]
        %v350 = vld [vmem:[%s285 + $0x28] sm:$0xff]
        %v351 = vld [vmem:[%s285 + $0x30] sm:$0xff]
        %v352 = vld [vmem:[%s285 + $0x38] sm:$0xff]
        %v353 = vld [vmem:[#allocation5] sm:$0xff]
        %v354 = vld [vmem:[#allocation5 + $0x8] sm:$0xff]
        %v355 = vld [vmem:[#allocation5 + $0x10] sm:$0xff]
        %v356 = vld [vmem:[#allocation5 + $0x18] sm:$0xff]
        %v357 = vld [vmem:[#allocation5 + $0x20] sm:$0xff]
        %v358 = vld [vmem:[#allocation5 + $0x28] sm:$0xff]
        %v359 = vld [vmem:[#allocation5 + $0x30] sm:$0xff]
        %v360 = vld [vmem:[#allocation5 + $0x38] sm:$0xff]
        %v361 = vld [vmem:[#allocation5 + $0x40] sm:$0xff]
        %v362 = vld [vmem:[#allocation5 + $0x48] sm:$0xff]
        %v363 = vld [vmem:[#allocation5 + $0x50] sm:$0xff]
        %v364 = vld [vmem:[#allocation5 + $0x58] sm:$0xff]
        %v365 = vld [vmem:[#allocation5 + $0x60] sm:$0xff]
        %v366 = vld [vmem:[#allocation5 + $0x68] sm:$0xff]
        %v367 = vld [vmem:[#allocation5 + $0x70] sm:$0xff]
        %v368 = vld [vmem:[#allocation5 + $0x78] sm:$0xff]
        %v369 = vld [vmem:[#allocation5 + $0x80] sm:$0xff]
        %v370 = vld [vmem:[#allocation5 + $0x88] sm:$0xff]
        %v371 = vld [vmem:[#allocation5 + $0x90] sm:$0xff]
        %v372 = vld [vmem:[#allocation5 + $0x98] sm:$0xff]
        %v373 = vld [vmem:[#allocation5 + $0xa0] sm:$0xff]
        %v374 = vld [vmem:[#allocation5 + $0xa8] sm:$0xff]
        %v375 = vld [vmem:[#allocation5 + $0xb0] sm:$0xff]
        %v376 = vld [vmem:[#allocation5 + $0xb8] sm:$0xff]
        %v377 = vld [vmem:[#allocation5 + $0xc0] sm:$0xff]
        %v378 = vld [vmem:[#allocation5 + $0xc8] sm:$0xff]
        %v379 = vld [vmem:[#allocation5 + $0xd0] sm:$0xff]
        %v380 = vld [vmem:[#allocation5 + $0xd8] sm:$0xff]
        %v381 = vld [vmem:[#allocation5 + $0xe0] sm:$0xff]
        %v382 = vld [vmem:[#allocation5 + $0xe8] sm:$0xff]
        %v383 = vld [vmem:[#allocation5 + $0xf0] sm:$0xff]
        %v384 = vld [vmem:[#allocation5 + $0xf8] sm:$0xff]
        %v385 = vld [vmem:[#allocation7] sm:$0x3]
        %v387 = vperm.slane %v385, 0
        %v388 = vperm.slane %v385, 1
        %391 = vmatpush.msra.mxu0 %v383
        %392 = vmatpush.msra.mxu0 %v381
        %393 = vmatpush.msra.mxu0 %v379
        %394 = vmatpush.msra.mxu0 %v377
        %395 = vmatpush.msra.mxu0 %v375
        %396 = vmatpush.msra.mxu0 %v373
        %397 = vmatpush.msra.mxu0 %v371
        %398 = vmatpush.msra.mxu0 %v369
        %399 = vmatpush.msra.mxu0 %v367
        %400 = vmatpush.msra.mxu0 %v365
        %401 = vmatpush.msra.mxu0 %v363
        %402 = vmatpush.msra.mxu0 %v361
        %403 = vmatpush.msra.mxu0 %v359
        %404 = vmatpush.msra.mxu0 %v357
        %405 = vmatpush.msra.mxu0 %v355
        %406 = vmatpush.msra.mxu0 %v353
        %407 = vmatmul.f32.gmra.mxu0 %v345
        %v408 = vpop.f32.mrf.mxu0
        %v409 = vadd.f32 %v387, %v408
        %410 = vmatmul.f32.gmra.mxu0 %v346
        %v411 = vpop.f32.mrf.mxu0
        %v412 = vadd.f32 %v387, %v411
        %413 = vmatmul.f32.gmra.mxu0 %v347
        %v414 = vpop.f32.mrf.mxu0
        %v415 = vadd.f32 %v387, %v414
        %416 = vmatmul.f32.gmra.mxu0 %v348
        %v417 = vpop.f32.mrf.mxu0
        %v418 = vadd.f32 %v387, %v417
        %419 = vmatmul.f32.gmra.mxu0 %v349
        %v420 = vpop.f32.mrf.mxu0
        %v421 = vadd.f32 %v387, %v420
        %422 = vmatmul.f32.gmra.mxu0 %v350
        %v423 = vpop.f32.mrf.mxu0
        %v424 = vadd.f32 %v387, %v423
        %425 = vmatmul.f32.gmra.mxu0 %v351
        %v426 = vpop.f32.mrf.mxu0
        %v427 = vadd.f32 %v387, %v426
        %428 = vmatmul.f32.gmra.mxu0 %v352
        %v429 = vpop.f32.mrf.mxu0
        %v430 = vadd.f32 %v387, %v429
        %431 = vdwg.mxu0
        %432 = vmatpush.msra.mxu0 %v384
        %433 = vmatpush.msra.mxu0 %v382
        %434 = vmatpush.msra.mxu0 %v380
        %435 = vmatpush.msra.mxu0 %v378
        %436 = vmatpush.msra.mxu0 %v376
        %437 = vmatpush.msra.mxu0 %v374
        %438 = vmatpush.msra.mxu0 %v372
        %439 = vmatpush.msra.mxu0 %v370
        %440 = vmatpush.msra.mxu0 %v368
        %441 = vmatpush.msra.mxu0 %v366
        %442 = vmatpush.msra.mxu0 %v364
        %443 = vmatpush.msra.mxu0 %v362
        %444 = vmatpush.msra.mxu0 %v360
        %445 = vmatpush.msra.mxu0 %v358
        %446 = vmatpush.msra.mxu0 %v356
        %447 = vmatpush.msra.mxu0 %v354
        %448 = vmatmul.f32.gmra.mxu0 %v345
        %v449 = vpop.f32.mrf.mxu0
        %v450 = vadd.f32 %v388, %v449
        %451 = vmatmul.f32.gmra.mxu0 %v346
        %v452 = vpop.f32.mrf.mxu0
        %v453 = vadd.f32 %v388, %v452
        %454 = vmatmul.f32.gmra.mxu0 %v347
        %v455 = vpop.f32.mrf.mxu0
        %v456 = vadd.f32 %v388, %v455
        %457 = vmatmul.f32.gmra.mxu0 %v348
        %v458 = vpop.f32.mrf.mxu0
        %v459 = vadd.f32 %v388, %v458
        %460 = vmatmul.f32.gmra.mxu0 %v349
        %v461 = vpop.f32.mrf.mxu0
        %v462 = vadd.f32 %v388, %v461
        %463 = vmatmul.f32.gmra.mxu0 %v350
        %v464 = vpop.f32.mrf.mxu0
        %v465 = vadd.f32 %v388, %v464
        %466 = vmatmul.f32.gmra.mxu0 %v351
        %v467 = vpop.f32.mrf.mxu0
        %v468 = vadd.f32 %v388, %v467
        %469 = vmatmul.f32.gmra.mxu0 %v352
        %v470 = vpop.f32.mrf.mxu0
        %v471 = vadd.f32 %v388, %v470
        %472 = vdwg.mxu0
        %v473 = vmax.f32 %v409, 0.0
        %v474 = vmax.f32 %v450, 0.0
        %v475 = vmax.f32 %v412, 0.0
        %v476 = vmax.f32 %v453, 0.0
        %v477 = vmax.f32 %v415, 0.0
        %v478 = vmax.f32 %v456, 0.0
        %v479 = vmax.f32 %v418, 0.0
        %v480 = vmax.f32 %v459, 0.0
        %v481 = vmax.f32 %v421, 0.0
        %v482 = vmax.f32 %v462, 0.0
        %v483 = vmax.f32 %v424, 0.0
        %v484 = vmax.f32 %v465, 0.0
        %v485 = vmax.f32 %v427, 0.0
        %v486 = vmax.f32 %v468, 0.0
        %v487 = vmax.f32 %v430, 0.0
        %v488 = vmax.f32 %v471, 0.0
        %v489 = vld [vmem:[%s327] sm:$0xff]
        %v490 = vld [vmem:[%s327 + $0x8] sm:$0xff]
        %v491 = vld [vmem:[%s327 + $0x10] sm:$0xff]
        %v492 = vld [vmem:[%s327 + $0x18] sm:$0xff]
        %v493 = vld [vmem:[%s327 + $0x20] sm:$0xff]
        %v494 = vld [vmem:[%s327 + $0x28] sm:$0xff]
        %v495 = vld [vmem:[%s327 + $0x30] sm:$0xff]
        %v496 = vld [vmem:[%s327 + $0x38] sm:$0xff]
        %v497 = vld [vmem:[#allocation8] sm:$0xff]
        %v498 = vld [vmem:[#allocation8 + $0x8] sm:$0xff]
        %v499 = vld [vmem:[#allocation8 + $0x10] sm:$0xff]
        %v500 = vld [vmem:[#allocation8 + $0x18] sm:$0xff]
        %v501 = vld [vmem:[#allocation8 + $0x20] sm:$0xff]
        %v502 = vld [vmem:[#allocation8 + $0x28] sm:$0xff]
        %v503 = vld [vmem:[#allocation8 + $0x30] sm:$0xff]
        %v504 = vld [vmem:[#allocation8 + $0x38] sm:$0xff]
        %v505 = vld [vmem:[#allocation8 + $0x40] sm:$0xff]
        %v506 = vld [vmem:[#allocation8 + $0x48] sm:$0xff]
        %v507 = vld [vmem:[#allocation8 + $0x50] sm:$0xff]
        %v508 = vld [vmem:[#allocation8 + $0x58] sm:$0xff]
        %v509 = vld [vmem:[#allocation8 + $0x60] sm:$0xff]
        %v510 = vld [vmem:[#allocation8 + $0x68] sm:$0xff]
        %v511 = vld [vmem:[#allocation8 + $0x70] sm:$0xff]
        %v512 = vld [vmem:[#allocation8 + $0x78] sm:$0xff]
        %v513 = vld [vmem:[#allocation8 + $0x80] sm:$0xff]
        %v514 = vld [vmem:[#allocation8 + $0x88] sm:$0xff]
        %v515 = vld [vmem:[#allocation8 + $0x90] sm:$0xff]
        %v516 = vld [vmem:[#allocation8 + $0x98] sm:$0xff]
        %v517 = vld [vmem:[#allocation8 + $0xa0] sm:$0xff]
        %v518 = vld [vmem:[#allocation8 + $0xa8] sm:$0xff]
        %v519 = vld [vmem:[#allocation8 + $0xb0] sm:$0xff]
        %v520 = vld [vmem:[#allocation8 + $0xb8] sm:$0xff]
        %v521 = vld [vmem:[#allocation8 + $0xc0] sm:$0xff]
        %v522 = vld [vmem:[#allocation8 + $0xc8] sm:$0xff]
        %v523 = vld [vmem:[#allocation8 + $0xd0] sm:$0xff]
        %v524 = vld [vmem:[#allocation8 + $0xd8] sm:$0xff]
        %v525 = vld [vmem:[#allocation8 + $0xe0] sm:$0xff]
        %v526 = vld [vmem:[#allocation8 + $0xe8] sm:$0xff]
        %v527 = vld [vmem:[#allocation8 + $0xf0] sm:$0xff]
        %v528 = vld [vmem:[#allocation8 + $0xf8] sm:$0xff]
        %529 = vmatpush.msra.mxu0 %v512
        %530 = vmatpush.msra.mxu0 %v511
        %531 = vmatpush.msra.mxu0 %v510
        %532 = vmatpush.msra.mxu0 %v509
        %533 = vmatpush.msra.mxu0 %v508
        %534 = vmatpush.msra.mxu0 %v507
        %535 = vmatpush.msra.mxu0 %v506
        %536 = vmatpush.msra.mxu0 %v505
        %537 = vmatpush.msra.mxu0 %v504
        %538 = vmatpush.msra.mxu0 %v503
        %539 = vmatpush.msra.mxu0 %v502
        %540 = vmatpush.msra.mxu0 %v501
        %541 = vmatpush.msra.mxu0 %v500
        %542 = vmatpush.msra.mxu0 %v499
        %543 = vmatpush.msra.mxu0 %v498
        %544 = vmatpush.msra.mxu0 %v497
        %545 = vmatmul.f32.gmra.mxu0 %v473
        %v546 = vpop.f32.mrf.mxu0
        %v547 = vadd.f32 0.0, %v546
        %548 = vmatmul.f32.gmra.mxu0 %v475
        %v549 = vpop.f32.mrf.mxu0
        %v550 = vadd.f32 0.0, %v549
        %551 = vmatmul.f32.gmra.mxu0 %v477
        %v552 = vpop.f32.mrf.mxu0
        %v553 = vadd.f32 0.0, %v552
        %554 = vmatmul.f32.gmra.mxu0 %v479
        %v555 = vpop.f32.mrf.mxu0
        %v556 = vadd.f32 0.0, %v555
        %557 = vmatmul.f32.gmra.mxu0 %v481
        %v558 = vpop.f32.mrf.mxu0
        %v559 = vadd.f32 0.0, %v558
        %560 = vmatmul.f32.gmra.mxu0 %v483
        %v561 = vpop.f32.mrf.mxu0
        %v562 = vadd.f32 0.0, %v561
        %563 = vmatmul.f32.gmra.mxu0 %v485
        %v564 = vpop.f32.mrf.mxu0
        %v565 = vadd.f32 0.0, %v564
        %566 = vmatmul.f32.gmra.mxu0 %v487
        %v567 = vpop.f32.mrf.mxu0
        %v568 = vadd.f32 0.0, %v567
        %569 = vdwg.mxu0
        %570 = vmatpush.msra.mxu0 %v528
        %571 = vmatpush.msra.mxu0 %v527
        %572 = vmatpush.msra.mxu0 %v526
        %573 = vmatpush.msra.mxu0 %v525
        %574 = vmatpush.msra.mxu0 %v524
        %575 = vmatpush.msra.mxu0 %v523
        %576 = vmatpush.msra.mxu0 %v522
        %577 = vmatpush.msra.mxu0 %v521
        %578 = vmatpush.msra.mxu0 %v520
        %579 = vmatpush.msra.mxu0 %v519
        %580 = vmatpush.msra.mxu0 %v518
        %581 = vmatpush.msra.mxu0 %v517
        %582 = vmatpush.msra.mxu0 %v516
        %583 = vmatpush.msra.mxu0 %v515
        %584 = vmatpush.msra.mxu0 %v514
        %585 = vmatpush.msra.mxu0 %v513
        %586 = vmatmul.f32.gmra.mxu0 %v474
        %v587 = vpop.f32.mrf.mxu0
        %v588 = vadd.f32 %v547, %v587
        %589 = vmatmul.f32.gmra.mxu0 %v476
        %v590 = vpop.f32.mrf.mxu0
        %v591 = vadd.f32 %v550, %v590
        %592 = vmatmul.f32.gmra.mxu0 %v478
        %v593 = vpop.f32.mrf.mxu0
        %v594 = vadd.f32 %v553, %v593
        %595 = vmatmul.f32.gmra.mxu0 %v480
        %v596 = vpop.f32.mrf.mxu0
        %v597 = vadd.f32 %v556, %v596
        %598 = vmatmul.f32.gmra.mxu0 %v482
        %v599 = vpop.f32.mrf.mxu0
        %v600 = vadd.f32 %v559, %v599
        %601 = vmatmul.f32.gmra.mxu0 %v484
        %v602 = vpop.f32.mrf.mxu0
        %v603 = vadd.f32 %v562, %v602
        %604 = vmatmul.f32.gmra.mxu0 %v486
        %v605 = vpop.f32.mrf.mxu0
        %v606 = vadd.f32 %v565, %v605
        %607 = vmatmul.f32.gmra.mxu0 %v488
        %v608 = vpop.f32.mrf.mxu0
        %v609 = vadd.f32 %v568, %v608
        %610 = vdwg.mxu0
        %v611 = vadd.f32 %v489, %v588
        %v612 = vadd.f32 %v490, %v591
        %v613 = vadd.f32 %v491, %v594
        %v614 = vadd.f32 %v492, %v597
        %v615 = vadd.f32 %v493, %v600
        %v616 = vadd.f32 %v494, %v603
        %v617 = vadd.f32 %v495, %v606
        %v618 = vadd.f32 %v496, %v609
        %619 = vst [vmem:[%s327] sm:$0xff] %v611
        %620 = vst [vmem:[%s327 + $0x8] sm:$0xff] %v612
        %621 = vst [vmem:[%s327 + $0x10] sm:$0xff] %v613
        %622 = vst [vmem:[%s327 + $0x18] sm:$0xff] %v614
        %623 = vst [vmem:[%s327 + $0x20] sm:$0xff] %v615
        %624 = vst [vmem:[%s327 + $0x28] sm:$0xff] %v616
        %625 = vst [vmem:[%s327 + $0x30] sm:$0xff] %v617
        %626 = vst [vmem:[%s327 + $0x38] sm:$0xff] %v618
        // Predicated region
        $region61: #{tpu_custom_call.1} parent=39 // pred_check
          %p627 = pneg %p333
        $region62: #{tpu_custom_call.1} parent=39 // pred_check_branch
          %629 = sbr.rel (%p627) target = $region64
        $region63: #{tpu_custom_call.1} parent=39 // pred_region
          %v630 = vld [vmem:[%s327] sm:$0xff]
          %v631 = vld [vmem:[%s327 + $0x8] sm:$0xff]
          %v632 = vld [vmem:[%s327 + $0x10] sm:$0xff]
          %v633 = vld [vmem:[%s327 + $0x18] sm:$0xff]
          %v634 = vld [vmem:[%s327 + $0x20] sm:$0xff]
          %v635 = vld [vmem:[%s327 + $0x28] sm:$0xff]
          %v636 = vld [vmem:[%s327 + $0x30] sm:$0xff]
          %v637 = vld [vmem:[%s327 + $0x38] sm:$0xff]
          %v638 = vld [vmem:[%s4] sm:$0x1]
          %v640 = vperm.slane %v638, 0
          %v642 = vadd.f32 %v630, %v640
          %v643 = vadd.f32 %v631, %v640
          %v644 = vadd.f32 %v632, %v640
          %v645 = vadd.f32 %v633, %v640
          %v646 = vadd.f32 %v634, %v640
          %v647 = vadd.f32 %v635, %v640
          %v648 = vadd.f32 %v636, %v640
          %v649 = vadd.f32 %v637, %v640
          %650 = vst [vmem:[%s327] sm:$0xff] %v642
          %651 = vst [vmem:[%s327 + $0x8] sm:$0xff] %v643
          %652 = vst [vmem:[%s327 + $0x10] sm:$0xff] %v644
          %653 = vst [vmem:[%s327 + $0x18] sm:$0xff] %v645
          %654 = vst [vmem:[%s327 + $0x20] sm:$0xff] %v646
          %655 = vst [vmem:[%s327 + $0x28] sm:$0xff] %v647
          %656 = vst [vmem:[%s327 + $0x30] sm:$0xff] %v648
          %657 = vst [vmem:[%s327 + $0x38] sm:$0xff] %v649
        $region64: #{tpu_custom_call.1} parent=39 // pred_fallthru
          _
        %s658 = sand.u32 %s169, 1
        %s659 = scalar_lea.sflag [#allocation4], %s658
        %s660 = sand.u32 %s169, 1
        %s661 = smul.addr %s660, 64
        %s662 = scalar_lea.vmem [#allocation10], %s661
        // Predicated region
        $region65: #{tpu_custom_call.1} parent=39 // pred_check
          %p663 = pneg %p179
        $region66: #{tpu_custom_call.1} parent=39 // pred_check_branch
          %665 = sbr.rel (%p663) target = $region68
        $region67: #{tpu_custom_call.1} parent=39 // pred_region
          %s666 = smul.u32 8, %s28
          %668 = vsyncadd %s659, 0
          %s669 = smul.addr %s666, 8
          %s670 = scalar_lea.hbm %s5, %s669
          %s671 = sshll.u32 %s662, 4
          %s672 = int_to_ptr.vmem [resolvable:$true] %s671
          %s673 = sshll.u32 %s670, 4
          %s674 = int_to_ptr.hbm [resolvable:$true] %s673
          %679 = dma.vmem_to_hbm [thread:$0]  %s672, 1024, %s674, %s659, 128, 128, 8
        $region68: #{tpu_custom_call.1} parent=39 // pred_fallthru
          _
      $region40: #{tpu_custom_call.1} parent=5 // pred_fallthru
        _
      %p680 = scmp.le.s32.totalorder 2, %s19
      // Predicated region
      $region69: #{tpu_custom_call.1} parent=5 // pred_check
        %p681 = pneg %p680
      $region70: #{tpu_custom_call.1} parent=5 // pred_check_branch
        %683 = sbr.rel (%p681) target = $region72
      $region71: #{tpu_custom_call.1} parent=5 // pred_region
        %s684 = ssub.s32 %s19, 2
        // Predicated region
        $region73: #{tpu_custom_call.1} parent=71 // pred_check
          %p685 = pneg %p185
        $region74: #{tpu_custom_call.1} parent=71 // pred_check_branch
          %687 = sbr.rel (%p685) target = $region76
        $region75: #{tpu_custom_call.1} parent=71 // pred_region
          %s688 = sand.u32 %s170, 1
          %s689 = scalar_lea.sflag [#allocation4], %s688
          %s690 = sand.u32 %s170, 1
          %s691 = smul.addr %s690, 64
          %s692 = scalar_lea.vmem [#allocation10], %s691
          %694 = dma.done %s689, 1024
        $region76: #{tpu_custom_call.1} parent=71 // pred_fallthru
          _
      $region72: #{tpu_custom_call.1} parent=5 // pred_fallthru
        _
    $region6: #{tpu_custom_call.1} parent=1 // loop_footer
      %s23 = sadd.s32 1, %s19
    $region7: #{tpu_custom_call.1} parent=1 // loop_footer_branch
      %18 = sbr.rel target = $region3
    $region8: #{tpu_custom_call.1} parent=1 // loop_exit
      _
    %695 = vsyncpa [#allocation3], 1
    %s696 = scalar_lea.sflag [#allocation3], 1
    %697 = vsyncpa %s696, 1
    %698 = vsyncpa [#allocation6], 1
    %699 = vsyncpa [#allocation9], 1
    %700 = vsyncpa [#allocation4], 1
    %s701 = scalar_lea.sflag [#allocation4], 1
    %702 = vsyncpa %s701, 1

</llo_original>
